<compile_context>
chip_gen: v7x
topology: tpu7x:2x2x1
jax: 0.10.0
libtpu: 0.0.40
codegen_flags: <defaults>
</compile_context>

<pallas_src>
import jax
import jax.numpy as jnp
from jax.experimental import pallas as pl
from jax.experimental.pallas import tpu as pltpu


# ----------------------------------------------------------------------------
# Kernel
# ----------------------------------------------------------------------------
def stack_fc_kernel(w_ref, *refs):
    """out = sum_s w[s] * x_s  (VPU scalar-broadcast FMAs).

    w_ref : (S,) float32 in SMEM (scalar multipliers)
    refs  : S input refs of shape (tb, tc), then the (tb, tc) output ref
    """
    x_refs, o_ref = refs[:-1], refs[-1]
    acc = x_refs[0][...].astype(jnp.float32) * w_ref[0]
    for s in range(1, len(x_refs)):
        acc = acc + x_refs[s][...].astype(jnp.float32) * w_ref[s]
    o_ref[...] = acc.astype(o_ref.dtype)


# ----------------------------------------------------------------------------
# Layout / tiling helpers
# ----------------------------------------------------------------------------
_VMEM_TILE_BUDGET = 32 * 1024 * 1024   # bytes for all double-buffered streams
_VMEM_LIMIT = 48 * 1024 * 1024         # explicit scoped-VMEM limit (fits v7x)


def _round_up(x, m):
    return ((x + m - 1) // m) * m


def _densify(b, c):
    """Lane-dense 2-D view of the (b, c) slab (free row-major reshape).

    Returns (rows, cols, densified). Only densifies when class_num < 128 and
    b*c factors into a multiple-of-128 lane width; otherwise keeps (b, c).
    """
    if c >= 128:
        return b, c, False
    total = b * c
    for lane in (1024, 512, 256, 128):
        if total % lane == 0:
            return total // lane, lane, True
    return b, c, False


def _choose_tiles(rows, cols, n_streams, dtype_bytes):
    """Pick (tb, tc) from a VMEM budget, balanced, with >=2 grid blocks when
    the data is large enough (v7x dual-TC)."""
    # Lane tile: full dim if <=128, else a balanced multiple of 128 (target 512).
    if cols <= 128:
        tc = cols
    else:
        n_c = max(1, pl.cdiv(cols, 512))
        tc = min(_round_up(pl.cdiv(cols, n_c), 128), _round_up(cols, 128))

    # Row tile: budget = 2 buffers x n_streams x tb*tc*dtype_bytes.
    max_tb = max(8, _VMEM_TILE_BUDGET // (2 * n_streams * tc * dtype_bytes))
    row_target = min(1024, max_tb)

    if rows <= row_target:
        if rows >= 16:
            # Split into 2 row blocks so both v7x TensorCores get work.
            tb = _round_up(pl.cdiv(rows, 2), 8)
        else:
            tb = rows
    else:
        n_r = max(2, pl.cdiv(rows, row_target))
        tb = _round_up(pl.cdiv(rows, n_r), 8)

    return tb, tc


# ----------------------------------------------------------------------------
# Forward wrapper
# ----------------------------------------------------------------------------
def stack_forward(x_list, weight, class_num):
    """JAX/Pallas equivalent of Stack.forward.

    x_list: list of `stack_num` arrays, each (batch, class_num)
    weight: (1, stack_num) fc weight (bias=False)
    returns: (batch, class_num) logits
    """
    s = len(x_list)
    assert s >= 1, "stack_num must be >= 1"
    b, c = x_list[0].shape
    assert c == class_num
    for x in x_list:
        assert x.shape == (b, c)
    dtype = x_list[0].dtype
    dtype_bytes = jnp.dtype(dtype).itemsize

    w = weight.reshape(s).astype(jnp.float32)  # (S,) scalars -> SMEM

    # Lane-densify (free view) when class_num < 128.
    rows, cols, densified = _densify(b, c)
    if densified:
        x_in = [x.reshape(rows, cols) for x in x_list]
    else:
        x_in = list(x_list)

    tb, tc = _choose_tiles(rows, cols, n_streams=s + 1, dtype_bytes=dtype_bytes)
    grid = (pl.cdiv(rows, tb), pl.cdiv(cols, tc))

    tile_spec = pl.BlockSpec((tb, tc), lambda i, j: (i, j))

    total = b * c
    cost = pl.CostEstimate(
        flops=2 * s * total,
        transcendentals=0,
        bytes_accessed=(s + 1) * total * dtype_bytes,
    )

    out = pl.pallas_call(
        stack_fc_kernel,
        out_shape=jax.ShapeDtypeStruct((rows, cols), dtype),
        grid=grid,
        in_specs=[pl.BlockSpec(memory_space=pltpu.MemorySpace.SMEM)]  # weights
        + [tile_spec] * s,                                            # x_s tiles
        out_specs=tile_spec,
        compiler_params=pltpu.CompilerParams(
            dimension_semantics=("parallel", "parallel"),
            vmem_limit_bytes=_VMEM_LIMIT,
        ),
        cost_estimate=cost,
    )(w, *x_in)

    if densified:
        out = out.reshape(b, c)
    # Already (batch, class_num) == .squeeze(1).view(-1, class_num)
    return out


# ----------------------------------------------------------------------------
# Test
# ----------------------------------------------------------------------------
def _reference(x_list, weight, class_num):
    stack_num = len(x_list)
    x_ref = jnp.stack(x_list, axis=2).reshape(-1, stack_num)
    return (x_ref @ weight.T).reshape(-1, class_num)


if __name__ == "__main__":
    # opt = {'stack_num': 4, 'class_num': 8}
    stack_num = 4
    class_num = 8
    batch = 2

    # fc.weight.data.fill_(0.25)  -> shape (1, stack_num)
    weight = jnp.full((1, stack_num), 0.25, dtype=jnp.float32)

    key = jax.random.PRNGKey(0)
    keys = jax.random.split(key, stack_num)
    x_list = [
        jax.random.normal(k, (batch, class_num), dtype=jnp.float32) for k in keys
    ]

    logit = stack_forward(x_list, weight, class_num)
    jax.block_until_ready(logit)
    ref = _reference(x_list, weight, class_num)
    assert logit.shape == (batch, class_num)
    assert jnp.allclose(logit, ref, atol=1e-5, rtol=1e-5)

    # Medium shape that triggers the lane-densifying reshape (class_num < 128).
    batch_m = 512
    keys_m = jax.random.split(jax.random.PRNGKey(1), stack_num)
    x_list_m = [
        jax.random.normal(k, (batch_m, class_num), dtype=jnp.float32) for k in keys_m
    ]
    logit_m = stack_forward(x_list_m, weight, class_num)
    jax.block_until_ready(logit_m)
    ref_m = _reference(x_list_m, weight, class_num)
    assert logit_m.shape == (batch_m, class_num)
    assert jnp.allclose(logit_m, ref_m, atol=1e-5, rtol=1e-5)

    # Larger shape exercising the multi-block grid / tiling path.
    batch2, class2 = 1024, 256
    keys2 = jax.random.split(jax.random.PRNGKey(2), stack_num)
    x_list2 = [
        jax.random.normal(k, (batch2, class2), dtype=jnp.float32) for k in keys2
    ]
    logit2 = stack_forward(x_list2, weight, class2)
    jax.block_until_ready(logit2)
    ref2 = _reference(x_list2, weight, class2)
    assert logit2.shape == (batch2, class2)
    assert jnp.allclose(logit2, ref2, atol=1e-5, rtol=1e-5)

    print("KERNEL_OK")
</pallas_src>

<mosaic_0001>
module attributes {stable_mosaic.version = 11 : i64} {
  func.func @stack_fc_kernel(%arg0: i32, %arg1: i32, %arg2: memref<4xf32, #tpu.memory_space<smem>>, %arg3: memref<2x8xf32, #tpu.memory_space<vmem>>, %arg4: memref<2x8xf32, #tpu.memory_space<vmem>>, %arg5: memref<2x8xf32, #tpu.memory_space<vmem>>, %arg6: memref<2x8xf32, #tpu.memory_space<vmem>>, %arg7: memref<2x8xf32, #tpu.memory_space<vmem>>) attributes {dimension_semantics = [#tpu.dimension_semantics<parallel>, #tpu.dimension_semantics<parallel>], iteration_bounds = array<i64: 1, 1>, scalar_prefetch = 0 : i64, scratch_operands = 0 : i64, tpu.core_type = #tpu.core_type<tc>, window_params = [{transform_indices = @transform_0, window_bounds = array<i64: 4>}, {transform_indices = @transform_1, window_bounds = array<i64: 2, 8>}, {transform_indices = @transform_2, window_bounds = array<i64: 2, 8>}, {transform_indices = @transform_3, window_bounds = array<i64: 2, 8>}, {transform_indices = @transform_4, window_bounds = array<i64: 2, 8>}, {transform_indices = @transform_5, window_bounds = array<i64: 2, 8>}]} {
    %c0 = arith.constant 0 : index
    %c0_0 = arith.constant 0 : index
    %0 = vector.load %arg3[%c0, %c0_0] : memref<2x8xf32, #tpu.memory_space<vmem>>, vector<2x8xf32>
    %c0_1 = arith.constant 0 : index
    %1 = memref.load %arg2[%c0_1] : memref<4xf32, #tpu.memory_space<smem>>
    %2 = vector.broadcast %1 : f32 to vector<2x8xf32>
    %3 = arith.mulf %0, %2 : vector<2x8xf32>
    %c0_2 = arith.constant 0 : index
    %c0_3 = arith.constant 0 : index
    %4 = vector.load %arg4[%c0_2, %c0_3] : memref<2x8xf32, #tpu.memory_space<vmem>>, vector<2x8xf32>
    %c1 = arith.constant 1 : index
    %5 = memref.load %arg2[%c1] : memref<4xf32, #tpu.memory_space<smem>>
    %6 = vector.broadcast %5 : f32 to vector<2x8xf32>
    %7 = arith.mulf %4, %6 : vector<2x8xf32>
    %8 = arith.addf %3, %7 : vector<2x8xf32>
    %c0_4 = arith.constant 0 : index
    %c0_5 = arith.constant 0 : index
    %9 = vector.load %arg5[%c0_4, %c0_5] : memref<2x8xf32, #tpu.memory_space<vmem>>, vector<2x8xf32>
    %c2 = arith.constant 2 : index
    %10 = memref.load %arg2[%c2] : memref<4xf32, #tpu.memory_space<smem>>
    %11 = vector.broadcast %10 : f32 to vector<2x8xf32>
    %12 = arith.mulf %9, %11 : vector<2x8xf32>
    %13 = arith.addf %8, %12 : vector<2x8xf32>
    %c0_6 = arith.constant 0 : index
    %c0_7 = arith.constant 0 : index
    %14 = vector.load %arg6[%c0_6, %c0_7] : memref<2x8xf32, #tpu.memory_space<vmem>>, vector<2x8xf32>
    %c3 = arith.constant 3 : index
    %15 = memref.load %arg2[%c3] : memref<4xf32, #tpu.memory_space<smem>>
    %16 = vector.broadcast %15 : f32 to vector<2x8xf32>
    %17 = arith.mulf %14, %16 : vector<2x8xf32>
    %18 = arith.addf %13, %17 : vector<2x8xf32>
    %c0_8 = arith.constant 0 : index
    %c0_9 = arith.constant 0 : index
    %19 = vector.load %arg7[%c0_8, %c0_9] : memref<2x8xf32, #tpu.memory_space<vmem>>, vector<2x8xf32>
    tpu.vector_store %arg7[%c0_8, %c0_9], %18 {strides = array<i32>} : memref<2x8xf32, #tpu.memory_space<vmem>>, vector<2x8xf32>,
    return
  }
  func.func @transform_0(%arg0: i32, %arg1: i32) -> i32 {
    %c0_i32 = arith.constant 0 : i32
    %c0_i32_0 = arith.constant 0 : i32
    return %c0_i32 : i32
  }
  func.func @transform_1(%arg0: i32, %arg1: i32) -> (i32, i32) {
    %c0_i32 = arith.constant 0 : i32
    return %arg0, %arg1 : i32, i32
  }
  func.func @transform_2(%arg0: i32, %arg1: i32) -> (i32, i32) {
    %c0_i32 = arith.constant 0 : i32
    return %arg0, %arg1 : i32, i32
  }
  func.func @transform_3(%arg0: i32, %arg1: i32) -> (i32, i32) {
    %c0_i32 = arith.constant 0 : i32
    return %arg0, %arg1 : i32, i32
  }
  func.func @transform_4(%arg0: i32, %arg1: i32) -> (i32, i32) {
    %c0_i32 = arith.constant 0 : i32
    return %arg0, %arg1 : i32, i32
  }
  func.func @transform_5(%arg0: i32, %arg1: i32) -> (i32, i32) {
    %c0_i32 = arith.constant 0 : i32
    return %arg0, %arg1 : i32, i32
  }
}

</mosaic_0001>

<llo_original>
// kernel: tpu_custom_call.1
$region0: #{tpu_custom_call.1}
  #allocation0 [shape = 'u32[]', space=smem, size = 0x4, offset = 0x4, fixed_abs, tag = 'smem constant byte address 0x4 - core index']
  #allocation1 [shape = 'u32[144,128]{1,0:T(1,128)}', space=vmem, size = 0x12000, scoped, tag = 'internal scratch']
  %s0 = inlined_call_operand.hbm [shape: f32[4], index: 0, kind: input, shape index: {}]
  %s1 = inlined_call_operand.vmem [shape: f32[2,8], index: 1, kind: input, shape index: {}]
  %s2 = inlined_call_operand.vmem [shape: f32[2,8], index: 2, kind: input, shape index: {}]
  %s3 = inlined_call_operand.vmem [shape: f32[2,8], index: 3, kind: input, shape index: {}]
  %s4 = inlined_call_operand.vmem [shape: f32[2,8], index: 4, kind: input, shape index: {}]
  %s5 = inlined_call_operand.hbm [shape: f32[2,8], index: 5, kind: output, shape index: {}]
  %s6 = sld [smem:[#allocation0]]
  $region34: #{tpu_custom_call.1} parent=0
    _
  %s8 = ssub.s32 1, %s6
  %s9 = scalar_select 0, %s8, %s6
  $region1: #{tpu_custom_call.1} parent=0
    #allocation2 [shape = 'u8[512]{0}', space=smem, size = 0x200, scoped, tag = 'input window, operand 0, single buffered']
    #allocation3 [shape = 's32[1]{0}', space=sflag, size = 0x4, scoped, tag = 'scoped memory for tpu_custom_call.1']
    #allocation4 [shape = 's32[1]{0}', space=sflag, size = 0x4, scoped, tag = 'scoped memory for tpu_custom_call.1']
    #allocation5 [shape = 'u8[1024]{0}', space=vmem, size = 0x400, scoped, tag = 'output window, operand 0, single buffered']
    %10 = vsyncpa [#allocation4], 0
    %11 = vsyncpa [#allocation3], 0
    // Predicated region
    $region2: #{tpu_custom_call.1} parent=1 // pred_check
      _
    $region3: #{tpu_custom_call.1} parent=1 // pred_check_branch
      %13 = sbr.rel (0) target = $region5
    $region4: #{tpu_custom_call.1} parent=1 // pred_region
      %s15 = ssub.s32 16, 16
      %16 = vsyncadd [#allocation4], %s15
      %19 = dma.hbm_to_smem %s0, 16, [#allocation2], [#allocation4]
    $region5: #{tpu_custom_call.1} parent=1 // pred_fallthru
      _
    // Predicated region
    $region6: #{tpu_custom_call.1} parent=1 // pred_check
      _
    $region7: #{tpu_custom_call.1} parent=1 // pred_check_branch
      %21 = sbr.rel (0) target = $region9
    $region8: #{tpu_custom_call.1} parent=1 // pred_region
      _
    $region9: #{tpu_custom_call.1} parent=1 // pred_fallthru
      _
    // Predicated region
    $region10: #{tpu_custom_call.1} parent=1 // pred_check
      _
    $region11: #{tpu_custom_call.1} parent=1 // pred_check_branch
      %23 = sbr.rel (0) target = $region13
    $region12: #{tpu_custom_call.1} parent=1 // pred_region
      _
    $region13: #{tpu_custom_call.1} parent=1 // pred_fallthru
      _
    // Predicated region
    $region14: #{tpu_custom_call.1} parent=1 // pred_check
      _
    $region15: #{tpu_custom_call.1} parent=1 // pred_check_branch
      %25 = sbr.rel (0) target = $region17
    $region16: #{tpu_custom_call.1} parent=1 // pred_region
      _
    $region17: #{tpu_custom_call.1} parent=1 // pred_fallthru
      _
    // Predicated region
    $region18: #{tpu_custom_call.1} parent=1 // pred_check
      _
    $region19: #{tpu_custom_call.1} parent=1 // pred_check_branch
      %27 = sbr.rel (0) target = $region21
    $region20: #{tpu_custom_call.1} parent=1 // pred_region
      _
    $region21: #{tpu_custom_call.1} parent=1 // pred_fallthru
      _
    // Predicated region
    $region22: #{tpu_custom_call.1} parent=1 // pred_check
      _
    $region23: #{tpu_custom_call.1} parent=1 // pred_check_branch
      %29 = sbr.rel (0) target = $region25
    $region24: #{tpu_custom_call.1} parent=1 // pred_region
      %30 = dma.done [#allocation4], 16
    $region25: #{tpu_custom_call.1} parent=1 // pred_fallthru
      _
    %31 = sfence
    %v32 = vld [vmem:[%s1] sm:$0x3]
    %s33 = sld [smem:[#allocation2]]
    %v34 = vstv %s33
    %v35 = vmul.f32 %v32, %v34
    %v36 = vld [vmem:[%s2] sm:$0x3]
    %s37 = sld [smem:[#allocation2 + $0x1]]
    %v38 = vstv %s37
    %v39 = vmul.f32 %v36, %v38
    %v40 = vadd.f32 %v35, %v39
    %v41 = vld [vmem:[%s3] sm:$0x3]
    %s42 = sld [smem:[#allocation2 + $0x2]]
    %v43 = vstv %s42
    %v44 = vmul.f32 %v41, %v43
    %v45 = vadd.f32 %v40, %v44
    %v46 = vld [vmem:[%s4] sm:$0x3]
    %s47 = sld [smem:[#allocation2 + $0x3]]
    %v48 = vstv %s47
    %v49 = vmul.f32 %v46, %v48
    %v50 = vadd.f32 %v45, %v49
    %vm51 = vcmask 58368
    %52 = vst.msk [vmem:[#allocation5] sm:$0x3] %vm51, %v50
    // Predicated region
    $region26: #{tpu_custom_call.1} parent=1 // pred_check
      _
    $region27: #{tpu_custom_call.1} parent=1 // pred_check_branch
      %54 = sbr.rel (0) target = $region29
    $region28: #{tpu_custom_call.1} parent=1 // pred_region
      %s56 = ssub.s32 32, 32
      %57 = vsyncadd [#allocation3], %s56
      %s59 = sshll.u32 [#allocation5], 4
      %s60 = int_to_ptr.vmem [resolvable:$true] %s59
      %62 = dma.vmem_to_hbm [thread:$0]  %s60, 32, %s5, [#allocation3]
    $region29: #{tpu_custom_call.1} parent=1 // pred_fallthru
      _
    // Predicated region
    $region30: #{tpu_custom_call.1} parent=1 // pred_check
      _
    $region31: #{tpu_custom_call.1} parent=1 // pred_check_branch
      %64 = sbr.rel (0) target = $region33
    $region32: #{tpu_custom_call.1} parent=1 // pred_region
      %65 = dma.done [#allocation3], 32
    $region33: #{tpu_custom_call.1} parent=1 // pred_fallthru
      _
    %66 = vsyncpa [#allocation3], 1
    %67 = vsyncpa [#allocation4], 1

</llo_original>
